<compile_context>
chip_gen: v5e
topology: v5e:2x2
jax: 0.10.0
libtpu: 0.0.40
codegen_flags: <defaults>
</compile_context>

<pallas_src>
import functools

import jax
import jax.numpy as jnp
from jax.experimental import pallas as pl
from jax.experimental.pallas import tpu as pltpu


# --------------------------------------------------------------------------- #
# VMEM sizing helpers (per-generation)
# --------------------------------------------------------------------------- #

def _block_budget(max_block_bytes=None):
    """Per-block VMEM budget + total VMEM capacity for this chip generation."""
    try:
        vmem_cap = int(pltpu.get_tpu_info().vmem_capacity_bytes)
    except Exception:
        vmem_cap = 64 * 1024 * 1024          # conservative: v7x per-TC VMEM
    budget = vmem_cap // 16                  # 8 MiB on v5e/v6e (128 MiB), 4 MiB on v7x
    if max_block_bytes is not None:
        budget = int(max_block_bytes)
    return budget, vmem_cap


def _vmem_limit(block_bytes, vmem_cap):
    """Scoped-VMEM limit covering 2x(in+out) buffers, f32 temps, weights."""
    need = 6 * block_bytes + (8 << 20)
    floor = min(32 << 20, vmem_cap // 2)
    return int(min(max(need, floor), vmem_cap * 3 // 4))


# --------------------------------------------------------------------------- #
# Kernels
# --------------------------------------------------------------------------- #

def _se_fused_kernel(x_ref, w1t_ref, w2t_ref, o_ref):
    """Single-read path: block = (tb, C, L); squeeze, excite, rescale."""
    x = x_ref[...]                                                  # (tb, C, L)
    # Squeeze: mean over L (lane axis), f32 accumulation.
    y = jnp.mean(x.astype(jnp.float32), axis=-1)                    # (tb, C)
    # Excitation: Linear(C->H) + ReLU, Linear(H->C) + Sigmoid (MXU, f32).
    h = jnp.maximum(
        jnp.dot(y, w1t_ref[...], preferred_element_type=jnp.float32), 0.0)
    s = jax.nn.sigmoid(
        jnp.dot(h, w2t_ref[...], preferred_element_type=jnp.float32))  # (tb, C)
    # Scale: f32 gate broadcast over L; multiply promotes to f32, cast on store.
    o_ref[...] = (x * s[:, :, None]).astype(o_ref.dtype)


def _se_gate_kernel(x_ref, w1t_ref, w2t_ref, g_ref, acc_ref, *, length):
    """Two-pass, pass 1: accumulate per-(b, c) sums over L tiles, emit gates."""
    l = pl.program_id(1)

    @pl.when(l == 0)
    def _():
        acc_ref[...] = jnp.zeros_like(acc_ref)

    x = x_ref[...]                                                  # (tb, C, tl)
    tl = x.shape[-1]
    if length % tl != 0:
        # Mask the padded tail of the last L tile (only emitted when needed).
        pos = l * tl + jax.lax.broadcasted_iota(jnp.int32, x.shape, 2)
        x = jnp.where(pos < length, x, jnp.zeros_like(x))
    acc_ref[...] += jnp.sum(x.astype(jnp.float32), axis=-1)         # (tb, C)

    @pl.when(l == pl.num_programs(1) - 1)
    def _():
        y = acc_ref[...] * (1.0 / float(length))                    # mean
        h = jnp.maximum(
            jnp.dot(y, w1t_ref[...], preferred_element_type=jnp.float32), 0.0)
        s = jax.nn.sigmoid(
            jnp.dot(h, w2t_ref[...], preferred_element_type=jnp.float32))
        g_ref[...] = s[:, :, None]                                  # (tb, C, 1)


def _se_scale_kernel(x_ref, g_ref, o_ref):
    """Two-pass, pass 2: out = x * gate, gate broadcast along the lane axis."""
    o_ref[...] = (x_ref[...] * g_ref[...]).astype(o_ref.dtype)


# --------------------------------------------------------------------------- #
# Wrappers
# --------------------------------------------------------------------------- #

def _se_fused(x, w1_t, w2_t, budget, vmem_cap, donate_x):
    B, C, L = x.shape
    H = w1_t.shape[1]
    itemsize = jnp.dtype(x.dtype).itemsize
    per_batch_bytes = C * L * itemsize

    # Batch tile: as large as the budget allows, capped so the grid keeps
    # >= min(B, 8) steps (pipeline depth + megacore sharding on v7x).
    min_steps = min(B, 8)
    tb = min(B,
             max(1, budget // per_batch_bytes),
             max(1, pl.cdiv(B, min_steps)))
    grid = (pl.cdiv(B, tb),)
    block_bytes = tb * per_batch_bytes

    return pl.pallas_call(
        _se_fused_kernel,
        out_shape=jax.ShapeDtypeStruct((B, C, L), x.dtype),
        grid_spec=pltpu.PrefetchScalarGridSpec(
            num_scalar_prefetch=0,
            grid=grid,
            in_specs=[
                pl.BlockSpec((tb, C, L), lambda b: (b, 0, 0)),
                pl.BlockSpec((C, H), lambda b: (0, 0)),
                pl.BlockSpec((H, C), lambda b: (0, 0)),
            ],
            out_specs=pl.BlockSpec((tb, C, L), lambda b: (b, 0, 0)),
        ),
        compiler_params=pltpu.CompilerParams(
            dimension_semantics=("parallel",),
            vmem_limit_bytes=_vmem_limit(block_bytes, vmem_cap),
        ),
        input_output_aliases={0: 0} if donate_x else {},
    )(x, w1_t, w2_t)


def _se_two_pass(x, w1_t, w2_t, budget, vmem_cap, donate_x):
    B, C, L = x.shape
    H = w1_t.shape[1]
    itemsize = jnp.dtype(x.dtype).itemsize

    # L tile: multiple of 128 (lane-dense loads/stores), sized to the budget,
    # preferring a divisor of L so the masked-tail path is not needed.
    if L <= 128:
        tl = L
    else:
        tl = max(128, (min(L, max(1, budget // (C * itemsize))) // 128) * 128)
        if L % tl != 0:
            for cand in range(tl, 127, -128):
                if L % cand == 0:
                    tl = cand
                    break
    block_bytes = C * tl * itemsize
    # TODO(synk): if even a (1, C, 128) block exceeds the budget (huge C), a
    # channel-tiled variant would be needed; bump the budget to stay correct.
    budget = max(budget, block_bytes)

    n_l = pl.cdiv(L, tl)
    want_steps = min(8, B * n_l)
    want_b_steps = max(1, -(-want_steps // n_l))
    tb = min(B,
             max(1, budget // block_bytes),
             max(1, pl.cdiv(B, want_b_steps)))
    block_bytes = tb * C * tl * itemsize
    grid = (pl.cdiv(B, tb), n_l)
    vmem_limit = _vmem_limit(block_bytes, vmem_cap)

    # Pass 1: per-(b, c) sums over L tiles (reduction axis last, "arbitrary"),
    # gate finalized on the last L step.  Gates stored as (B, C, 1) f32.
    gates = pl.pallas_call(
        functools.partial(_se_gate_kernel, length=L),
        out_shape=jax.ShapeDtypeStruct((B, C, 1), jnp.float32),
        grid_spec=pltpu.PrefetchScalarGridSpec(
            num_scalar_prefetch=0,
            grid=grid,
            in_specs=[
                pl.BlockSpec((tb, C, tl), lambda b, l: (b, 0, l)),
                pl.BlockSpec((C, H), lambda b, l: (0, 0)),
                pl.BlockSpec((H, C), lambda b, l: (0, 0)),
            ],
            out_specs=pl.BlockSpec((tb, C, 1), lambda b, l: (b, 0, 0)),
            scratch_shapes=[pltpu.VMEM((tb, C), jnp.float32)],
        ),
        compiler_params=pltpu.CompilerParams(
            dimension_semantics=("parallel", "arbitrary"),
            vmem_limit_bytes=vmem_limit,
        ),
    )(x, w1_t, w2_t)

    # Pass 2: rescale x by the gate, fully parallel grid, lane-dense L tiles.
    return pl.pallas_call(
        _se_scale_kernel,
        out_shape=jax.ShapeDtypeStruct((B, C, L), x.dtype),
        grid_spec=pltpu.PrefetchScalarGridSpec(
            num_scalar_prefetch=0,
            grid=grid,
            in_specs=[
                pl.BlockSpec((tb, C, tl), lambda b, l: (b, 0, l)),
                pl.BlockSpec((tb, C, 1), lambda b, l: (b, 0, 0)),
            ],
            out_specs=pl.BlockSpec((tb, C, tl), lambda b, l: (b, 0, l)),
        ),
        compiler_params=pltpu.CompilerParams(
            dimension_semantics=("parallel", "parallel"),
            vmem_limit_bytes=vmem_limit,
        ),
        input_output_aliases={0: 0} if donate_x else {},
    )(x, gates)


def se_block(x, w1, w2, *, max_block_bytes=None, donate_x=False):
    """SEBlock forward. x: (B, C, L); w1: (C//r, C); w2: (C, C//r) -> (B, C, L).

    donate_x=True aliases the output onto x's buffer (caller must not reuse x).
    """
    B, C, L = x.shape
    itemsize = jnp.dtype(x.dtype).itemsize

    # Only the tiny FC weights are transposed (negligible); activations stay in
    # their native (B, C, L) layout — no full-tensor HBM transpose passes.
    w1_t = jnp.transpose(w1)   # (C, H)
    w2_t = jnp.transpose(w2)   # (H, C)

    budget, vmem_cap = _block_budget(max_block_bytes)
    per_batch_bytes = C * L * itemsize

    if per_batch_bytes <= budget:
        return _se_fused(x, w1_t, w2_t, budget, vmem_cap, donate_x)
    return _se_two_pass(x, w1_t, w2_t, budget, vmem_cap, donate_x)


# --------------------------------------------------------------------------- #
# Test
# --------------------------------------------------------------------------- #

if __name__ == "__main__":
    def reference(x, w1, w2):
        y = jnp.mean(x, axis=-1)
        y = jax.nn.sigmoid(jnp.maximum(y @ w1.T, 0.0) @ w2.T)
        return x * y[:, :, None]

    key = jax.random.PRNGKey(0)
    reduction = 16

    # Config 1: small shapes — exercises the fused single-read path.
    B, C, L = 2, 64, 16
    H = C // reduction
    k1, k2, k3, key = jax.random.split(key, 4)
    x = jax.random.normal(k1, (B, C, L), dtype=jnp.float32)
    w1 = jax.random.normal(k2, (H, C), dtype=jnp.float32) / jnp.sqrt(C)
    w2 = jax.random.normal(k3, (C, H), dtype=jnp.float32) / jnp.sqrt(H)

    out = se_block(x, w1, w2)
    jax.block_until_ready(out)
    assert jnp.allclose(out, reference(x, w1, w2), atol=1e-5, rtol=1e-5)

    # Config 2: larger L with a tiny forced block budget — exercises the
    # two-pass (sum -> scale) path with 128-wide lane-dense L tiles.
    B2, C2, L2 = 2, 64, 256
    H2 = C2 // reduction
    k1, k2, k3, key = jax.random.split(key, 4)
    x2 = jax.random.normal(k1, (B2, C2, L2), dtype=jnp.float32)
    w1b = jax.random.normal(k2, (H2, C2), dtype=jnp.float32) / jnp.sqrt(C2)
    w2b = jax.random.normal(k3, (C2, H2), dtype=jnp.float32) / jnp.sqrt(H2)

    out2 = se_block(x2, w1b, w2b, max_block_bytes=32 * 1024)
    jax.block_until_ready(out2)
    assert jnp.allclose(out2, reference(x2, w1b, w2b), atol=1e-5, rtol=1e-5)

    print("KERNEL_OK")
</pallas_src>

<mosaic_0001>
module attributes {stable_mosaic.version = 11 : i64} {
  func.func @_se_fused_kernel(%arg0: i32, %arg1: memref<1x64x16xf32, #tpu.memory_space<vmem>>, %arg2: memref<64x4xf32, #tpu.memory_space<vmem>>, %arg3: memref<4x64xf32, #tpu.memory_space<vmem>>, %arg4: memref<1x64x16xf32, #tpu.memory_space<vmem>>) attributes {dimension_semantics = [#tpu.dimension_semantics<parallel>], iteration_bounds = array<i64: 2>, scalar_prefetch = 0 : i64, scratch_operands = 0 : i64, tpu.core_type = #tpu.core_type<tc>, window_params = [{transform_indices = @transform_0, window_bounds = array<i64: 1, 64, 16>}, {pipeline_mode = #tpu.pipeline_mode<synchronous>, transform_indices = @transform_1, window_bounds = array<i64: 64, 4>}, {pipeline_mode = #tpu.pipeline_mode<synchronous>, transform_indices = @transform_2, window_bounds = array<i64: 4, 64>}, {transform_indices = @transform_3, window_bounds = array<i64: 1, 64, 16>}]} {
    %c0 = arith.constant 0 : index
    %c0_0 = arith.constant 0 : index
    %c0_1 = arith.constant 0 : index
    %0 = vector.load %arg1[%c0, %c0_0, %c0_1] : memref<1x64x16xf32, #tpu.memory_space<vmem>>, vector<1x64x16xf32>
    %cst = arith.constant dense<0.000000e+00> : vector<1x64xf32>
    %1 = vector.multi_reduction <add>, %0, %cst [2] : vector<1x64x16xf32> to vector<1x64xf32>
    %cst_2 = arith.constant 1.600000e+01 : f32
    %2 = vector.broadcast %cst_2 : f32 to vector<1x64xf32>
    %3 = arith.divf %1, %2 : vector<1x64xf32>
    %c0_3 = arith.constant 0 : index
    %c0_4 = arith.constant 0 : index
    %4 = vector.load %arg2[%c0_3, %c0_4] : memref<64x4xf32, #tpu.memory_space<vmem>>, vector<64x4xf32>
    %cst_5 = arith.constant dense<0.000000e+00> : vector<1x4xf32>
    %5 = tpu.matmul %3, %4, %cst_5 {dimension_numbers = #tpu.dot_dimension_numbers<[1], [0], [0], [1], [0, 0, 1, 1], [], []>} : vector<1x64xf32>, vector<64x4xf32>, vector<1x4xf32> -> vector<1x4xf32>
    %cst_6 = arith.constant 0.000000e+00 : f32
    %6 = vector.broadcast %cst_6 : f32 to vector<1x4xf32>
    %7 = arith.maximumf %5, %6 : vector<1x4xf32>
    %c0_7 = arith.constant 0 : index
    %c0_8 = arith.constant 0 : index
    %8 = vector.load %arg3[%c0_7, %c0_8] : memref<4x64xf32, #tpu.memory_space<vmem>>, vector<4x64xf32>
    %cst_9 = arith.constant dense<0.000000e+00> : vector<1x64xf32>
    %9 = tpu.matmul %7, %8, %cst_9 {dimension_numbers = #tpu.dot_dimension_numbers<[1], [0], [0], [1], [0, 0, 1, 1], [], []>} : vector<1x4xf32>, vector<4x64xf32>, vector<1x64xf32> -> vector<1x64xf32>
    %10 = arith.negf %9 : vector<1x64xf32>
    %11 = math.exp %10 : vector<1x64xf32>
    %cst_10 = arith.constant 1.000000e+00 : f32
    %12 = vector.broadcast %cst_10 : f32 to vector<1x64xf32>
    %13 = arith.addf %12, %11 : vector<1x64xf32>
    %14 = arith.divf %12, %13 : vector<1x64xf32>
    %15 = vector.shape_cast %14 : vector<1x64xf32> to vector<1x64x1xf32>
    %16 = vector.broadcast %15 : vector<1x64x1xf32> to vector<1x64x16xf32>
    %17 = arith.mulf %0, %16 : vector<1x64x16xf32>
    %c0_11 = arith.constant 0 : index
    %c0_12 = arith.constant 0 : index
    %c0_13 = arith.constant 0 : index
    %18 = vector.load %arg4[%c0_11, %c0_12, %c0_13] : memref<1x64x16xf32, #tpu.memory_space<vmem>>, vector<1x64x16xf32>
    tpu.vector_store %arg4[%c0_11, %c0_12, %c0_13], %17 {strides = array<i32>} : memref<1x64x16xf32, #tpu.memory_space<vmem>>, vector<1x64x16xf32>,
    return
  }
  func.func @transform_0(%arg0: i32) -> (i32, i32, i32) {
    %c0_i32 = arith.constant 0 : i32
    %c0_i32_0 = arith.constant 0 : i32
    %c0_i32_1 = arith.constant 0 : i32
    return %arg0, %c0_i32, %c0_i32_0 : i32, i32, i32
  }
  func.func @transform_1(%arg0: i32) -> (i32, i32) {
    %c0_i32 = arith.constant 0 : i32
    %c0_i32_0 = arith.constant 0 : i32
    %c0_i32_1 = arith.constant 0 : i32
    return %c0_i32, %c0_i32_0 : i32, i32
  }
  func.func @transform_2(%arg0: i32) -> (i32, i32) {
    %c0_i32 = arith.constant 0 : i32
    %c0_i32_0 = arith.constant 0 : i32
    %c0_i32_1 = arith.constant 0 : i32
    return %c0_i32, %c0_i32_0 : i32, i32
  }
  func.func @transform_3(%arg0: i32) -> (i32, i32, i32) {
    %c0_i32 = arith.constant 0 : i32
    %c0_i32_0 = arith.constant 0 : i32
    %c0_i32_1 = arith.constant 0 : i32
    return %arg0, %c0_i32, %c0_i32_0 : i32, i32, i32
  }
}

</mosaic_0001>

<llo_original>
// kernel: tpu_custom_call.1
$region0: #{tpu_custom_call.1}
  #allocation0 [shape = 'u32[]', space=smem, size = 0x4, offset = 0x4, fixed_abs, tag = 'smem constant byte address 0x4 - core index']
  #allocation1 [shape = 'u32[72,128]{1,0:T(1,128)}', space=vmem, size = 0x9000, scoped, tag = 'internal scratch']
  %s0 = inlined_call_operand.vmem [shape: f32[2,64,16], index: 0, kind: input, shape index: {}]
  %s1 = inlined_call_operand.vmem [shape: f32[64,4], index: 1, kind: input, shape index: {}]
  %s2 = inlined_call_operand.vmem [shape: f32[4,64], index: 2, kind: input, shape index: {}]
  %s3 = inlined_call_operand.vmem [shape: f32[2,64,16], index: 3, kind: output, shape index: {}]
  %s4 = sld [smem:[#allocation0]]
  $region45: #{tpu_custom_call.1} parent=0
    _
  %s6 = ssub.s32 1, %s4
  %s7 = scalar_select 0, %s6, %s4
  loop: start=0, step=1, limit=4
  $region2: #{tpu_custom_call.1} parent=0 // loop_pre_header
    _
  $region3: #{tpu_custom_call.1} parent=0 // loop_header
    %s9 = sphi 0, %s13
    %p10 = scmp.ge.s32.totalorder %s9, 4
    %s19 = sphi 0, %s21
    %s22 = sphi 0, %s19
    %s23 = sphi 0, %s22
    %s39 = sphi 0, %s23
    %s43 = sphi 0, %s43
    %s45 = sphi 0, %s43
    %s46 = sphi 0, %s45
    %s60 = sphi 0, %s46
    %s64 = sphi 0, %s64
    %s66 = sphi 0, %s64
    %s67 = sphi 0, %s66
    %s81 = sphi 0, %s67
    %s87 = sphi 0, %s89
    %s90 = sphi 0, %s87
    %s91 = sphi 0, %s90
    %s107 = sphi 0, %s91
  $region4: #{tpu_custom_call.1} parent=0 // loop_header_branch
    %12 = sbr.rel (%p10) target = $region8
  $region5: #{tpu_custom_call.1} parent=0 // loop_body
    %s14 = ssub.s32 %s9, 1
    %s15 = ssub.s32 %s9, 2
    %s16 = sadd.s32 %s9, 1
    %s17 = ssub.s32 %s9, %s16
    %p18 = scmp.eq.s32.totalorder %s17, 0
    %s20 = sadd.s32 %s19, 1
    %s21 = scalar_select %p18, %s19, %s20
    %p24 = pneg %p18
    %p25 = scmp.eq.s32.totalorder %s9, 1
    %p26 = por %p24, %p25
    %p27 = scmp.ne.s32.totalorder %s19, %s22
    %p28 = scmp.eq.s32.totalorder %s9, 0
    %p29 = por %p27, %p28
    %p30 = scmp.ne.s32.totalorder %s19, %s22
    %p31 = scmp.eq.s32.totalorder %s14, 1
    %p32 = por %p30, %p31
    %p33 = scmp.ne.s32.totalorder %s22, %s23
    %p34 = scmp.eq.s32.totalorder %s14, 0
    %p35 = por %p33, %p34
    %p36 = scmp.ne.s32.totalorder %s22, %s23
    %p37 = scmp.eq.s32.totalorder %s15, 1
    %p38 = por %p36, %p37
    %p40 = scmp.ne.s32.totalorder %s23, %s39
    %p41 = scmp.eq.s32.totalorder %s15, 0
    %p42 = por %p40, %p41
    %s44 = sadd.s32 %s43, 1
    %p47 = scmp.eq.s32.totalorder %s9, 1
    %p48 = scmp.ne.s32.totalorder %s43, %s45
    %p49 = scmp.eq.s32.totalorder %s9, 0
    %p50 = por %p48, %p49
    %p51 = scmp.ne.s32.totalorder %s43, %s45
    %p52 = scmp.eq.s32.totalorder %s14, 1
    %p53 = por %p51, %p52
    %p54 = scmp.ne.s32.totalorder %s45, %s46
    %p55 = scmp.eq.s32.totalorder %s14, 0
    %p56 = por %p54, %p55
    %p57 = scmp.ne.s32.totalorder %s45, %s46
    %p58 = scmp.eq.s32.totalorder %s15, 1
    %p59 = por %p57, %p58
    %p61 = scmp.ne.s32.totalorder %s46, %s60
    %p62 = scmp.eq.s32.totalorder %s15, 0
    %p63 = por %p61, %p62
    %s65 = sadd.s32 %s64, 1
    %p68 = scmp.eq.s32.totalorder %s9, 1
    %p69 = scmp.ne.s32.totalorder %s64, %s66
    %p70 = scmp.eq.s32.totalorder %s9, 0
    %p71 = por %p69, %p70
    %p72 = scmp.ne.s32.totalorder %s64, %s66
    %p73 = scmp.eq.s32.totalorder %s14, 1
    %p74 = por %p72, %p73
    %p75 = scmp.ne.s32.totalorder %s66, %s67
    %p76 = scmp.eq.s32.totalorder %s14, 0
    %p77 = por %p75, %p76
    %p78 = scmp.ne.s32.totalorder %s66, %s67
    %p79 = scmp.eq.s32.totalorder %s15, 1
    %p80 = por %p78, %p79
    %p82 = scmp.ne.s32.totalorder %s67, %s81
    %p83 = scmp.eq.s32.totalorder %s15, 0
    %p84 = por %p82, %p83
    %s85 = ssub.s32 %s9, %s16
    %p86 = scmp.eq.s32.totalorder %s85, 0
    %s88 = sadd.s32 %s87, 1
    %s89 = scalar_select %p86, %s87, %s88
    %p92 = pneg %p86
    %p93 = scmp.eq.s32.totalorder %s9, 1
    %p94 = por %p92, %p93
    %p95 = scmp.ne.s32.totalorder %s87, %s90
    %p96 = scmp.eq.s32.totalorder %s9, 0
    %p97 = por %p95, %p96
    %p98 = scmp.ne.s32.totalorder %s87, %s90
    %p99 = scmp.eq.s32.totalorder %s14, 1
    %p100 = por %p98, %p99
    %p101 = scmp.ne.s32.totalorder %s90, %s91
    %p102 = scmp.eq.s32.totalorder %s14, 0
    %p103 = por %p101, %p102
    %p104 = scmp.ne.s32.totalorder %s90, %s91
    %p105 = scmp.eq.s32.totalorder %s15, 1
    %p106 = por %p104, %p105
    %p108 = scmp.ne.s32.totalorder %s91, %s107
    %p109 = scmp.eq.s32.totalorder %s15, 0
    %p110 = por %p108, %p109
    %p111 = scmp.le.s32.totalorder 1, %s9
    %p112 = scmp.lt.s32.totalorder %s9, 3
    %p113 = pnand %p111, %p112
    %p114 = pneg %p113
    // Predicated region
    $region9: #{tpu_custom_call.1} parent=5 // pred_check
      _
    $region10: #{tpu_custom_call.1} parent=5 // pred_check_branch
      %116 = sbr.rel (%p113) target = $region12
    $region11: #{tpu_custom_call.1} parent=5 // pred_region
      %s117 = ssub.s32 %s9, 1
      // Predicated region
      $region13: #{tpu_custom_call.1} parent=11 // pred_check
        %p118 = pneg %p56
      $region14: #{tpu_custom_call.1} parent=11 // pred_check_branch
        %120 = sbr.rel (%p118) target = $region16
      $region15: #{tpu_custom_call.1} parent=11 // pred_region
        _
      $region16: #{tpu_custom_call.1} parent=11 // pred_fallthru
        _
      // Predicated region
      $region17: #{tpu_custom_call.1} parent=11 // pred_check
        %p121 = pneg %p77
      $region18: #{tpu_custom_call.1} parent=11 // pred_check_branch
        %123 = sbr.rel (%p121) target = $region20
      $region19: #{tpu_custom_call.1} parent=11 // pred_region
        _
      $region20: #{tpu_custom_call.1} parent=11 // pred_fallthru
        _
    $region12: #{tpu_custom_call.1} parent=5 // pred_fallthru
      _
    %p124 = scmp.lt.s32.totalorder %s9, 2
    // Predicated region
    $region21: #{tpu_custom_call.1} parent=5 // pred_check
      %p125 = pneg %p124
    $region22: #{tpu_custom_call.1} parent=5 // pred_check_branch
      %127 = sbr.rel (%p125) target = $region24
    $region23: #{tpu_custom_call.1} parent=5 // pred_region
      // Predicated region
      $region25: #{tpu_custom_call.1} parent=23 // pred_check
        %p128 = pneg %p29
      $region26: #{tpu_custom_call.1} parent=23 // pred_check_branch
        %130 = sbr.rel (%p128) target = $region28
      $region27: #{tpu_custom_call.1} parent=23 // pred_region
        %p131 = scmp.lt.s32.totalorder %s9, 1
        %s132 = scalar_select %p131, %s9, 1
        %s133 = smul.addr %s132, 8
        %s134 = smul.addr %s133, 8
        %s135 = scalar_lea.vmem %s0, %s134
      $region28: #{tpu_custom_call.1} parent=23 // pred_fallthru
        _
    $region24: #{tpu_custom_call.1} parent=5 // pred_fallthru
      _
    %p136 = scmp.le.s32.totalorder 1, %s9
    %p137 = scmp.lt.s32.totalorder %s9, 3
    %p138 = pnand %p136, %p137
    %p139 = pneg %p138
    // Predicated region
    $region29: #{tpu_custom_call.1} parent=5 // pred_check
      _
    $region30: #{tpu_custom_call.1} parent=5 // pred_check_branch
      %141 = sbr.rel (%p138) target = $region32
    $region31: #{tpu_custom_call.1} parent=5 // pred_region
      %s142 = ssub.s32 %s9, 1
      %p143 = scmp.lt.s32.totalorder %s14, 1
      %s144 = scalar_select %p143, %s14, 1
      %s145 = smul.addr %s144, 8
      %s146 = smul.addr %s145, 8
      %s147 = scalar_lea.vmem %s0, %s146
      %p148 = pneg %p35
      %p149 = pneg %p32
      %p150 = pneg %p56
      %p151 = pneg %p53
      %p152 = pneg %p77
      %p153 = pneg %p74
      %p154 = pneg %p103
      %p155 = pneg %p100
      %p156 = scmp.lt.s32.totalorder %s14, 1
      %s157 = scalar_select %p156, %s14, 1
      %s158 = smul.addr %s157, 8
      %s159 = smul.addr %s158, 8
      %s160 = scalar_lea.vmem %s3, %s159
      %p161 = scmp.lt.s32.totalorder %s14, 1
      %s162 = scalar_select %p161, %s14, 1
      %s163 = smul.addr %s162, 8
      %s164 = smul.addr %s163, 8
      %s165 = scalar_lea.vmem %s0, %s164
      %p166 = scmp.lt.s32.totalorder %s14, 1
      %s167 = scalar_select %p166, %s14, 1
      %s168 = smul.addr %s167, 8
      %s169 = smul.addr %s168, 8
      %s170 = scalar_lea.vmem %s3, %s169
      %v171 = vld [vmem:[%s165] sm:$0xff]
      %v172 = vld [vmem:[%s165 + $0x8] sm:$0xff]
      %v173 = vld [vmem:[%s165 + $0x10] sm:$0xff]
      %v174 = vld [vmem:[%s165 + $0x18] sm:$0xff]
      %v175 = vld [vmem:[%s165 + $0x20] sm:$0xff]
      %v176 = vld [vmem:[%s165 + $0x28] sm:$0xff]
      %v177 = vld [vmem:[%s165 + $0x30] sm:$0xff]
      %v178 = vld [vmem:[%s165 + $0x38] sm:$0xff]
      %vm179 = vcmask 130048
      %v180 = vsel %vm179, %v171, 0.0
      %181 = vadd.xlane.f32.xlu0 %v180
      %v182 = vpop.xlane.xlu0 %181
      %v183 = vsel %vm179, %v172, 0.0
      %184 = vadd.xlane.f32.xlu0 %v183
      %v185 = vpop.xlane.xlu0 %184
      %v186 = vsel %vm179, %v173, 0.0
      %187 = vadd.xlane.f32.xlu0 %v186
      %v188 = vpop.xlane.xlu0 %187
      %v189 = vsel %vm179, %v174, 0.0
      %190 = vadd.xlane.f32.xlu0 %v189
      %v191 = vpop.xlane.xlu0 %190
      %v192 = vsel %vm179, %v175, 0.0
      %193 = vadd.xlane.f32.xlu0 %v192
      %v194 = vpop.xlane.xlu0 %193
      %v195 = vsel %vm179, %v176, 0.0
      %196 = vadd.xlane.f32.xlu0 %v195
      %v197 = vpop.xlane.xlu0 %196
      %v198 = vsel %vm179, %v177, 0.0
      %199 = vadd.xlane.f32.xlu0 %v198
      %v200 = vpop.xlane.xlu0 %199
      %v201 = vsel %vm179, %v178, 0.0
      %202 = vadd.xlane.f32.xlu0 %v201
      %v203 = vpop.xlane.xlu0 %202
      %v204 = vrcp.pop 16.0
      %v205 = vmul.f32 16.0, %v204
      %v206 = vsub.f32 1.0, %v205
      %v207 = vmul.f32 %v204, %v206
      %v208 = vadd.f32 %v204, %v207
      %vm209 = vweird.f32 %v204
      %v210 = vsel %vm209, %v204, %v208
      %v211 = vmul.f32 %v182, %v210
      %v212 = vmul.f32 %v185, %v210
      %v213 = vmul.f32 %v188, %v210
      %v214 = vmul.f32 %v191, %v210
      %v215 = vmul.f32 %v194, %v210
      %v216 = vmul.f32 %v197, %v210
      %v217 = vmul.f32 %v200, %v210
      %v218 = vmul.f32 %v203, %v210
      %v219 = vld [vmem:[%s1] sm:$0xff]
      %v220 = vld [vmem:[%s1 + $0x8] sm:$0xff]
      %v221 = vld [vmem:[%s1 + $0x10] sm:$0xff]
      %v222 = vld [vmem:[%s1 + $0x18] sm:$0xff]
      %v223 = vld [vmem:[%s1 + $0x20] sm:$0xff]
      %v224 = vld [vmem:[%s1 + $0x28] sm:$0xff]
      %v225 = vld [vmem:[%s1 + $0x30] sm:$0xff]
      %v226 = vld [vmem:[%s1 + $0x38] sm:$0xff]
      %v235 = vlaneseq
      %v236 = vand.u32 %v235, 127
      %v237 = vperm.slane %v211, %v236
      %v238 = vadd.s32 %v236, 4294967288
      %v239 = vperm.slane %v212, %v238
      %vm240 = vcmask 130112
      %v241 = vsel %vm240, %v239, %v237
      %v242 = vadd.s32 %v236, 4294967280
      %v243 = vperm.slane %v213, %v242
      %vm244 = vcmask 195712
      %v245 = vsel %vm244, %v243, %v241
      %v246 = vadd.s32 %v236, 4294967272
      %v247 = vperm.slane %v214, %v246
      %vm248 = vcmask 261312
      %v249 = vsel %vm248, %v247, %v245
      %v250 = vadd.s32 %v236, 4294967264
      %v251 = vperm.slane %v215, %v250
      %vm252 = vcmask 326912
      %v253 = vsel %vm252, %v251, %v249
      %v254 = vadd.s32 %v236, 4294967256
      %v255 = vperm.slane %v216, %v254
      %vm256 = vcmask 392512
      %v257 = vsel %vm256, %v255, %v253
      %v258 = vadd.s32 %v236, 4294967248
      %v259 = vperm.slane %v217, %v258
      %vm260 = vcmask 458112
      %v261 = vsel %vm260, %v259, %v257
      %v262 = vadd.s32 %v236, 4294967240
      %v263 = vperm.slane %v218, %v262
      %vm264 = vcmask 523712
      %v265 = vsel %vm264, %v263, %v261
      %vm266 = vcmask 523264
      %v267 = vsel %vm266, %v265, 0
      %269 = vmatpush.msra.mxu0 0.0
      %270 = vmatpush.msra.mxu0 0.0
      %271 = vmatpush.msra.mxu0 0.0
      %272 = vmatpush.msra.mxu0 0.0
      %273 = vmatpush.msra.mxu0 0.0
      %274 = vmatpush.msra.mxu0 0.0
      %275 = vmatpush.msra.mxu0 0.0
      %276 = vmatpush.msra.mxu0 0.0
      %277 = vmatpush.msra.mxu0 %v226
      %278 = vmatpush.msra.mxu0 %v225
      %279 = vmatpush.msra.mxu0 %v224
      %280 = vmatpush.msra.mxu0 %v223
      %281 = vmatpush.msra.mxu0 %v222
      %282 = vmatpush.msra.mxu0 %v221
      %283 = vmatpush.msra.mxu0 %v220
      %284 = vmatpush.msra.mxu0 %v219
      %285 = vmatmul.f32.gmra.mxu0 %v267
      %v286 = vpop.f32.mrf.mxu0
      %v287 = vadd.f32 0.0, %v286
      %288 = vdwg.mxu0
      %v289 = vmax.f32 %v287, 0.0
      %v290 = vld [vmem:[%s2] sm:$0xf]
      %vm291 = vcmask 31744
      %v293 = vsel %vm291, %v289, 0
      %vm295 = vcmask 1043456
      %v297 = vsel %vm295, %v290, 0
      %299 = vmatpush.msra.mxu0 0.0
      %300 = vmatpush.msra.mxu0 0.0
      %301 = vmatpush.msra.mxu0 0.0
      %302 = vmatpush.msra.mxu0 0.0
      %303 = vmatpush.msra.mxu0 0.0
      %304 = vmatpush.msra.mxu0 0.0
      %305 = vmatpush.msra.mxu0 0.0
      %306 = vmatpush.msra.mxu0 0.0
      %307 = vmatpush.msra.mxu0 0.0
      %308 = vmatpush.msra.mxu0 0.0
      %309 = vmatpush.msra.mxu0 0.0
      %310 = vmatpush.msra.mxu0 0.0
      %311 = vmatpush.msra.mxu0 0.0
      %312 = vmatpush.msra.mxu0 0.0
      %313 = vmatpush.msra.mxu0 0.0
      %314 = vmatpush.msra.mxu0 %v297
      %315 = vmatmul.f32.gmra.mxu0 %v293
      %v316 = vpop.f32.mrf.mxu0
      %v317 = vadd.f32 0.0, %v316
      %318 = vdwg.mxu0
      %v319 = vxor.u32 %v317, 2147483648
      %v320 = vmul.f32 %v319, 1.442695
      %v321 = vpow.pop %v320
      %v322 = vadd.f32 %v321, 1.0
      %v323 = vrcp.pop %v322
      %v324 = vmul.f32 %v322, %v323
      %v325 = vsub.f32 1.0, %v324
      %v326 = vmul.f32 %v323, %v325
      %v327 = vadd.f32 %v323, %v326
      %vm328 = vweird.f32 %v322
      %vm329 = vweird.f32 %v323
      %vm330 = vmor %vm328, %vm329
      %v331 = vsel %vm330, %v323, %v327
      %v332 = vand.u32 2147483647, %v322
      %vm333 = vcmp.eq.f32.partialorder %v332, 8.507059e+37
      %v334 = vand.u32 %v322, 2147483648
      %v335 = vor.u32 1.1754944e-38, %v334
      %v336 = vsel %vm333, %v335, %v331
      %v337 = vmul.f32 1.0, %v336
      %v338 = vperm.slane %v337, 0
      %v339 = vlaneseq
      %v340 = vshrl.u32 %v339, 7
      %342 = vset.pattern.permute.xlu0 %v340
      %343 = vperm.xlu0 %342, %v338
      %v344 = vpop.permute.xlu0 %343
      %v345 = vlaneseq
      %v346 = vshrl.u32 %v345, 7
      %v347 = vadd.s32 %v346, 8
      %348 = vset.pattern.permute.xlu0 %v347
      %349 = vperm.xlu0 %348, %v338
      %v350 = vpop.permute.xlu0 %349
      %v351 = vlaneseq
      %v352 = vshrl.u32 %v351, 7
      %v353 = vadd.s32 %v352, 16
      %354 = vset.pattern.permute.xlu0 %v353
      %355 = vperm.xlu0 %354, %v338
      %v356 = vpop.permute.xlu0 %355
      %v357 = vlaneseq
      %v358 = vshrl.u32 %v357, 7
      %v359 = vadd.s32 %v358, 24
      %360 = vset.pattern.permute.xlu0 %v359
      %361 = vperm.xlu0 %360, %v338
      %v362 = vpop.permute.xlu0 %361
      %v363 = vlaneseq
      %v364 = vshrl.u32 %v363, 7
      %v365 = vadd.s32 %v364, 32
      %366 = vset.pattern.permute.xlu0 %v365
      %367 = vperm.xlu0 %366, %v338
      %v368 = vpop.permute.xlu0 %367
      %v369 = vlaneseq
      %v370 = vshrl.u32 %v369, 7
      %v371 = vadd.s32 %v370, 40
      %372 = vset.pattern.permute.xlu0 %v371
      %373 = vperm.xlu0 %372, %v338
      %v374 = vpop.permute.xlu0 %373
      %v375 = vlaneseq
      %v376 = vshrl.u32 %v375, 7
      %v377 = vadd.s32 %v376, 48
      %378 = vset.pattern.permute.xlu0 %v377
      %379 = vperm.xlu0 %378, %v338
      %v380 = vpop.permute.xlu0 %379
      %v381 = vlaneseq
      %v382 = vshrl.u32 %v381, 7
      %v383 = vadd.s32 %v382, 56
      %384 = vset.pattern.permute.xlu0 %v383
      %385 = vperm.xlu0 %384, %v338
      %v386 = vpop.permute.xlu0 %385
      %v387 = vmul.f32 %v171, %v344
      %v388 = vmul.f32 %v172, %v350
      %v389 = vmul.f32 %v173, %v356
      %v390 = vmul.f32 %v174, %v362
      %v391 = vmul.f32 %v175, %v368
      %v392 = vmul.f32 %v176, %v374
      %v393 = vmul.f32 %v177, %v380
      %v394 = vmul.f32 %v178, %v386
      %395 = vst.msk [vmem:[%s170] sm:$0xff] %vm179, %v387
      %396 = vst.msk [vmem:[%s170 + $0x8] sm:$0xff] %vm179, %v388
      %397 = vst.msk [vmem:[%s170 + $0x10] sm:$0xff] %vm179, %v389
      %398 = vst.msk [vmem:[%s170 + $0x18] sm:$0xff] %vm179, %v390
      %399 = vst.msk [vmem:[%s170 + $0x20] sm:$0xff] %vm179, %v391
      %400 = vst.msk [vmem:[%s170 + $0x28] sm:$0xff] %vm179, %v392
      %401 = vst.msk [vmem:[%s170 + $0x30] sm:$0xff] %vm179, %v393
      %402 = vst.msk [vmem:[%s170 + $0x38] sm:$0xff] %vm179, %v394
      %p403 = scmp.lt.s32.totalorder %s14, 1
      %s404 = scalar_select %p403, %s14, 1
      %s405 = smul.addr %s404, 8
      %s406 = smul.addr %s405, 8
      %s407 = scalar_lea.vmem %s3, %s406
      // Predicated region
      $region33: #{tpu_custom_call.1} parent=31 // pred_check
        %p408 = pneg %p100
      $region34: #{tpu_custom_call.1} parent=31 // pred_check_branch
        %410 = sbr.rel (%p408) target = $region36
      $region35: #{tpu_custom_call.1} parent=31 // pred_region
        _
      $region36: #{tpu_custom_call.1} parent=31 // pred_fallthru
        _
    $region32: #{tpu_custom_call.1} parent=5 // pred_fallthru
      _
    %p411 = scmp.le.s32.totalorder 2, %s9
    // Predicated region
    $region37: #{tpu_custom_call.1} parent=5 // pred_check
      %p412 = pneg %p411
    $region38: #{tpu_custom_call.1} parent=5 // pred_check_branch
      %414 = sbr.rel (%p412) target = $region40
    $region39: #{tpu_custom_call.1} parent=5 // pred_region
      %s415 = ssub.s32 %s9, 2
      // Predicated region
      $region41: #{tpu_custom_call.1} parent=39 // pred_check
        %p416 = pneg %p106
      $region42: #{tpu_custom_call.1} parent=39 // pred_check_branch
        %418 = sbr.rel (%p416) target = $region44
      $region43: #{tpu_custom_call.1} parent=39 // pred_region
        %p419 = scmp.lt.s32.totalorder %s15, 1
        %s420 = scalar_select %p419, %s15, 1
        %s421 = smul.addr %s420, 8
        %s422 = smul.addr %s421, 8
        %s423 = scalar_lea.vmem %s3, %s422
      $region44: #{tpu_custom_call.1} parent=39 // pred_fallthru
        _
    $region40: #{tpu_custom_call.1} parent=5 // pred_fallthru
      _
  $region6: #{tpu_custom_call.1} parent=0 // loop_footer
    %s13 = sadd.s32 1, %s9
  $region7: #{tpu_custom_call.1} parent=0 // loop_footer_branch
    %8 = sbr.rel target = $region3
  $region8: #{tpu_custom_call.1} parent=0 // loop_exit
    _

</llo_original>
